<compile_context>
chip_gen: v5e
topology: v5e:2x2
jax: 0.10.0
libtpu: 0.0.40
codegen_flags: <defaults>
</compile_context>

<pallas_src>
import functools
import math

import jax
import jax.numpy as jnp
from jax.experimental import pallas as pl
from jax.experimental.pallas import tpu as pltpu


# ----------------------------------------------------------------------------
# Kernel factory
# ----------------------------------------------------------------------------
def _make_concat_kernel(dims, lane_aligned):
    """Build a concat kernel specialized to the (static) modality widths."""
    offsets = []
    off = 0
    for d in dims:
        offsets.append(off)
        off += d

    def kernel(*refs):
        *in_refs, out_ref = refs
        odt = out_ref.dtype
        if lane_aligned:
            # Every offset / width is a multiple of 128 lanes: each store is
            # already an unmasked lane-dense vst; skip the concat temporary.
            for r, o, d in zip(in_refs, offsets, dims):
                out_ref[:, o:o + d] = r[...].astype(odt)
        else:
            # Lane-unaligned widths: build the fused row-tile in registers and
            # issue ONE full-width lane-dense store per grid step.
            out_ref[...] = jnp.concatenate(
                [r[...].astype(odt) for r in in_refs], axis=-1
            )

    return kernel


def _row_index_map(i):
    # Blocked index: (batch-block i, feature-block 0).
    return (i, 0)


# ----------------------------------------------------------------------------
# Tiling helpers
# ----------------------------------------------------------------------------
def _vmem_budget_and_limit():
    """Per-step VMEM budget and scoped-VMEM limit, generation-aware."""
    cap = 64 * 1024 * 1024  # conservative default = v7x per-TC physical VMEM
    try:
        info = pltpu.get_tpu_info()
        cap = int(getattr(info, "vmem_capacity_bytes", cap))
    except Exception:
        pass
    step_budget = max(8 << 20, cap // 4)        # ~16 MiB (v7x), ~32 MiB (v5e/v6e)
    vmem_limit = min(cap * 3 // 4, 112 << 20)   # headroom below physical VMEM
    return step_budget, vmem_limit


def _row_multiple(dtypes):
    """Dtype-aware sublane multiple: 8 for 4-byte, 16 for 2-byte, 32 for 1-byte."""
    m = 8
    for dt in dtypes:
        isz = jnp.dtype(dt).itemsize
        if isz == 2:
            m = max(m, 16)
        elif isz == 1:
            m = max(m, 32)
    return m


def _bytes_per_row(dims, in_dtypes, out_dtype, materialize_concat):
    """Live VMEM bytes per batch row per grid step (incl. double-buffering)."""
    osz = jnp.dtype(out_dtype).itemsize
    total = sum(dims)
    b = 0
    for d, dt in zip(dims, in_dtypes):
        b += 2 * d * jnp.dtype(dt).itemsize     # input double buffers
    b += 2 * total * osz                         # output double buffers
    if materialize_concat:
        b += total * osz                         # concat temporary
    return b


def _ceil_to(x, m):
    return -(-x // m) * m


def _pick_batch_tile(rows, bytes_per_row, row_multiple, step_budget):
    """Largest row tile (multiple of row_multiple) within the VMEM budget,
    capped so the grid has >= 2 steps whenever the batch allows it."""
    if rows <= row_multiple:
        return rows  # single full block (block_shape == full dim is legal)
    budget_rows = max(row_multiple, step_budget // max(bytes_per_row, 1))
    tb = max(row_multiple, (budget_rows // row_multiple) * row_multiple)
    # Keep at least 2 grid steps (v7x megacore sharding + DMA pipelining).
    half_up = _ceil_to(-(-rows // 2), row_multiple)
    tb = min(tb, half_up)
    return tb


# ----------------------------------------------------------------------------
# Pallas call wrapper (2-D: [rows, D_i] -> [rows, sum(D_i)])
# ----------------------------------------------------------------------------
@functools.partial(jax.jit, static_argnames=("out_dtype", "block_rows"))
def _fused_concat_2d(*flat, out_dtype, block_rows=None):
    rows = flat[0].shape[0]
    dims = tuple(int(m.shape[-1]) for m in flat)
    total = sum(dims)
    in_dtypes = tuple(m.dtype for m in flat)
    lane_aligned = all(d % 128 == 0 for d in dims)

    step_budget, vmem_limit = _vmem_budget_and_limit()
    row_multiple = _row_multiple(in_dtypes + (out_dtype,))
    bpr = _bytes_per_row(dims, in_dtypes, out_dtype, not lane_aligned)

    if block_rows is not None and rows > row_multiple:
        tb = max(row_multiple, _ceil_to(int(block_rows), row_multiple))
        tb = min(tb, _ceil_to(rows, row_multiple))
    elif block_rows is not None:
        tb = rows
    else:
        tb = _pick_batch_tile(rows, bpr, row_multiple, step_budget)

    grid = (pl.cdiv(rows, tb),)  # ragged last block is masked by Pallas
    kernel = _make_concat_kernel(dims, lane_aligned)

    in_specs = [pl.BlockSpec((tb, d), _row_index_map) for d in dims]
    out_spec = pl.BlockSpec((tb, total), _row_index_map)

    return pl.pallas_call(
        kernel,
        out_shape=jax.ShapeDtypeStruct((rows, total), out_dtype),
        grid=grid,
        in_specs=in_specs,
        out_specs=out_spec,
        compiler_params=pltpu.CompilerParams(
            dimension_semantics=("parallel",),   # megacore sharding on v7x
            vmem_limit_bytes=vmem_limit,
        ),
    )(*flat)


# ----------------------------------------------------------------------------
# Public API (mirrors SimpleFusion.forward)
# ----------------------------------------------------------------------------
def simple_fusion(modal_list, total_dim=None, block_rows=None):
    """JAX/Pallas equivalent of SimpleFusion.forward.

    modal_list: list of jnp arrays (shape [..., D_i]) or None entries.
    total_dim is accepted for API parity; like the PyTorch module, it is not
    used in the forward computation.
    """
    valid_modals = [m for m in modal_list if m is not None]
    if not valid_modals:
        # Same fallback semantics as the PyTorch module: zeros(1, 128).
        return jnp.zeros((1, 128), dtype=jnp.float32)

    # torch.cat promotes to a common dtype; the cast itself happens in-kernel.
    out_dtype = jnp.result_type(*[m.dtype for m in valid_modals])

    if len(valid_modals) == 1:
        # cat of a single tensor is the identity (content-wise).
        return valid_modals[0].astype(out_dtype)

    # Flatten leading dims so the kernel always sees [rows, D_i].
    lead_shape = valid_modals[0].shape[:-1]
    rows = int(math.prod(lead_shape)) if lead_shape else 1
    flat = [m.reshape(rows, m.shape[-1]) for m in valid_modals]

    fused = _fused_concat_2d(*flat, out_dtype=out_dtype, block_rows=block_rows)
    return fused.reshape(*lead_shape, fused.shape[-1])


# ----------------------------------------------------------------------------
# Demo / self-test
# ----------------------------------------------------------------------------
if __name__ == "__main__":
    key = jax.random.PRNGKey(0)
    k1, k2, k3, k4, k5, k6 = jax.random.split(key, 6)

    # Case 1: lane-unaligned widths (32/64/32) -> register concat, one store.
    B = 8
    m1 = jax.random.normal(k1, (B, 32), dtype=jnp.float32)
    m2 = jax.random.normal(k2, (B, 64), dtype=jnp.float32)
    m3 = jax.random.normal(k3, (B, 32), dtype=jnp.float32)
    out = jax.block_until_ready(simple_fusion([m1, None, m2, m3], total_dim=128))
    assert out.shape == (B, 128), out.shape
    assert jnp.array_equal(out, jnp.concatenate([m1, m2, m3], axis=-1))

    # Case 2: 128-aligned widths -> per-modality lane-dense slice stores,
    # multi-step batch grid (grid=(4,)) exercising pipelining / megacore path.
    B2 = 32
    a = jax.random.normal(k4, (B2, 128), dtype=jnp.float32)
    b = jax.random.normal(k5, (B2, 256), dtype=jnp.float32)
    out2 = jax.block_until_ready(simple_fusion([a, b], block_rows=8))
    assert jnp.array_equal(out2, jnp.concatenate([a, b], axis=-1))

    # Case 3: ragged batch (rows % 8 != 0) -> cdiv grid with masked last block.
    B3 = 10
    c = jax.random.normal(k6, (B3, 32), dtype=jnp.float32)
    d = jax.random.normal(k1, (B3, 96), dtype=jnp.float32)
    out3 = jax.block_until_ready(simple_fusion([c, None, d]))
    assert jnp.array_equal(out3, jnp.concatenate([c, d], axis=-1))

    # Case 4: mixed dtypes -> promotion done inside the kernel.
    e = jax.random.normal(k2, (16, 64), dtype=jnp.bfloat16)
    f = jax.random.normal(k3, (16, 64), dtype=jnp.float32)
    out4 = jax.block_until_ready(simple_fusion([e, f]))
    assert out4.dtype == jnp.float32
    assert jnp.array_equal(
        out4, jnp.concatenate([e.astype(jnp.float32), f], axis=-1))

    # Case 5: 3-D leading dims are flattened to rows.
    g = jax.random.normal(k4, (2, 4, 32), dtype=jnp.float32)
    h = jax.random.normal(k5, (2, 4, 96), dtype=jnp.float32)
    out5 = jax.block_until_ready(simple_fusion([g, h]))
    assert out5.shape == (2, 4, 128)
    assert jnp.array_equal(out5, jnp.concatenate([g, h], axis=-1))

    # Single valid modality short-circuits (content identity).
    single = jax.block_until_ready(simple_fusion([None, m2]))
    assert jnp.array_equal(single, m2)

    # Empty-list fallback matches PyTorch: zeros(1, 128).
    empty_out = jax.block_until_ready(simple_fusion([None, None]))
    assert empty_out.shape == (1, 128) and jnp.all(empty_out == 0)

    print("KERNEL_OK")
</pallas_src>

<mosaic_0001>
module attributes {stable_mosaic.version = 11 : i64} {
  func.func @kernel(%arg0: i32, %arg1: memref<8x32xf32, #tpu.memory_space<vmem>>, %arg2: memref<8x64xf32, #tpu.memory_space<vmem>>, %arg3: memref<8x32xf32, #tpu.memory_space<vmem>>, %arg4: memref<8x128xf32, #tpu.memory_space<vmem>>) attributes {dimension_semantics = [#tpu.dimension_semantics<parallel>], iteration_bounds = array<i64: 1>, scalar_prefetch = 0 : i64, scratch_operands = 0 : i64, tpu.core_type = #tpu.core_type<tc>, window_params = [{transform_indices = @transform_0, window_bounds = array<i64: 8, 32>}, {transform_indices = @transform_1, window_bounds = array<i64: 8, 64>}, {transform_indices = @transform_2, window_bounds = array<i64: 8, 32>}, {transform_indices = @transform_3, window_bounds = array<i64: 8, 128>}]} {
    %c0 = arith.constant 0 : index
    %c0_0 = arith.constant 0 : index
    %0 = vector.load %arg1[%c0, %c0_0] : memref<8x32xf32, #tpu.memory_space<vmem>>, vector<8x32xf32>
    %c0_1 = arith.constant 0 : index
    %c0_2 = arith.constant 0 : index
    %1 = vector.load %arg2[%c0_1, %c0_2] : memref<8x64xf32, #tpu.memory_space<vmem>>, vector<8x64xf32>
    %c0_3 = arith.constant 0 : index
    %c0_4 = arith.constant 0 : index
    %2 = vector.load %arg3[%c0_3, %c0_4] : memref<8x32xf32, #tpu.memory_space<vmem>>, vector<8x32xf32>
    %3 = tpu.concatenate %0, %1, %2 in 1 : vector<8x32xf32>, vector<8x64xf32>, vector<8x32xf32> -> vector<8x128xf32>
    %c0_5 = arith.constant 0 : index
    %c0_6 = arith.constant 0 : index
    %4 = vector.load %arg4[%c0_5, %c0_6] : memref<8x128xf32, #tpu.memory_space<vmem>>, vector<8x128xf32>
    tpu.vector_store %arg4[%c0_5, %c0_6], %3 {strides = array<i32>} : memref<8x128xf32, #tpu.memory_space<vmem>>, vector<8x128xf32>,
    return
  }
  func.func @transform_0(%arg0: i32) -> (i32, i32) {
    %c0_i32 = arith.constant 0 : i32
    %c0_i32_0 = arith.constant 0 : i32
    return %arg0, %c0_i32 : i32, i32
  }
  func.func @transform_1(%arg0: i32) -> (i32, i32) {
    %c0_i32 = arith.constant 0 : i32
    %c0_i32_0 = arith.constant 0 : i32
    return %arg0, %c0_i32 : i32, i32
  }
  func.func @transform_2(%arg0: i32) -> (i32, i32) {
    %c0_i32 = arith.constant 0 : i32
    %c0_i32_0 = arith.constant 0 : i32
    return %arg0, %c0_i32 : i32, i32
  }
  func.func @transform_3(%arg0: i32) -> (i32, i32) {
    %c0_i32 = arith.constant 0 : i32
    %c0_i32_0 = arith.constant 0 : i32
    return %arg0, %c0_i32 : i32, i32
  }
}

</mosaic_0001>

<llo_original>
// kernel: _fused_concat_2d.1
$region0: #{_fused_concat_2d.1}
  #allocation0 [shape = 'u32[]', space=smem, size = 0x4, offset = 0x4, fixed_abs, tag = 'smem constant byte address 0x4 - core index']
  #allocation1 [shape = 'u32[72,128]{1,0:T(1,128)}', space=vmem, size = 0x9000, scoped, tag = 'internal scratch']
  %s0 = inlined_call_operand.hbm [shape: f32[8,32], index: 0, kind: input, shape index: {}]
  %s1 = inlined_call_operand.hbm [shape: f32[8,64], index: 1, kind: input, shape index: {}]
  %s2 = inlined_call_operand.hbm [shape: f32[8,32], index: 2, kind: input, shape index: {}]
  %s3 = inlined_call_operand.hbm [shape: f32[8,128], index: 3, kind: output, shape index: {}]
  %s4 = sld [smem:[#allocation0]]
  $region34: #{_fused_concat_2d.1} parent=0
    _
  %s6 = ssub.s32 1, %s4
  %s7 = scalar_select 0, %s6, %s4
  $region1: #{_fused_concat_2d.1} parent=0
    #allocation2 [shape = 'u8[4096]{0}', space=vmem, size = 0x1000, scoped, tag = 'input window, operand 0, single buffered']
    #allocation3 [shape = 's32[1]{0}', space=sflag, size = 0x4, scoped, tag = 'scoped memory for _fused_concat_2d.1']
    #allocation4 [shape = 's32[1]{0}', space=sflag, size = 0x4, scoped, tag = 'scoped memory for _fused_concat_2d.1']
    #allocation5 [shape = 'u8[4096]{0}', space=vmem, size = 0x1000, scoped, tag = 'input window, operand 1, single buffered']
    #allocation6 [shape = 's32[1]{0}', space=sflag, size = 0x4, scoped, tag = 'scoped memory for _fused_concat_2d.1']
    #allocation7 [shape = 'u8[4096]{0}', space=vmem, size = 0x1000, scoped, tag = 'input window, operand 2, single buffered']
    #allocation8 [shape = 'u8[4096]{0}', space=vmem, size = 0x1000, scoped, tag = 'output window, operand 0, single buffered']
    %8 = vsyncpa [#allocation3], 0
    %9 = vsyncpa [#allocation6], 0
    %10 = vsyncpa [#allocation4], 0
    // Predicated region
    $region2: #{_fused_concat_2d.1} parent=1 // pred_check
      _
    $region3: #{_fused_concat_2d.1} parent=1 // pred_check_branch
      %12 = sbr.rel (0) target = $region5
    $region4: #{_fused_concat_2d.1} parent=1 // pred_region
      %14 = vsyncadd [#allocation3], 0
      %s16 = sshll.u32 %s0, 4
      %s17 = int_to_ptr.hbm [resolvable:$true] %s16
      %s18 = sshll.u32 [#allocation2], 4
      %s19 = int_to_ptr.vmem [resolvable:$true] %s18
      %21 = dma.hbm_to_vmem [thread:$0]  %s17, 128, %s19, [#allocation3]
    $region5: #{_fused_concat_2d.1} parent=1 // pred_fallthru
      _
    // Predicated region
    $region6: #{_fused_concat_2d.1} parent=1 // pred_check
      _
    $region7: #{_fused_concat_2d.1} parent=1 // pred_check_branch
      %23 = sbr.rel (0) target = $region9
    $region8: #{_fused_concat_2d.1} parent=1 // pred_region
      %25 = vsyncadd [#allocation6], 0
      %s27 = sshll.u32 %s1, 4
      %s28 = int_to_ptr.hbm [resolvable:$true] %s27
      %s29 = sshll.u32 [#allocation5], 4
      %s30 = int_to_ptr.vmem [resolvable:$true] %s29
      %32 = dma.hbm_to_vmem [thread:$0]  %s28, 128, %s30, [#allocation6]
    $region9: #{_fused_concat_2d.1} parent=1 // pred_fallthru
      _
    // Predicated region
    $region10: #{_fused_concat_2d.1} parent=1 // pred_check
      _
    $region11: #{_fused_concat_2d.1} parent=1 // pred_check_branch
      %34 = sbr.rel (0) target = $region13
    $region12: #{_fused_concat_2d.1} parent=1 // pred_region
      %36 = vsyncadd [#allocation6], 0
      %s38 = sshll.u32 %s2, 4
      %s39 = int_to_ptr.hbm [resolvable:$true] %s38
      %s40 = sshll.u32 [#allocation7], 4
      %s41 = int_to_ptr.vmem [resolvable:$true] %s40
      %43 = dma.hbm_to_vmem [thread:$0]  %s39, 128, %s41, [#allocation6]
    $region13: #{_fused_concat_2d.1} parent=1 // pred_fallthru
      _
    // Predicated region
    $region14: #{_fused_concat_2d.1} parent=1 // pred_check
      _
    $region15: #{_fused_concat_2d.1} parent=1 // pred_check_branch
      %45 = sbr.rel (0) target = $region17
    $region16: #{_fused_concat_2d.1} parent=1 // pred_region
      %47 = dma.done [#allocation3], 128
    $region17: #{_fused_concat_2d.1} parent=1 // pred_fallthru
      _
    // Predicated region
    $region18: #{_fused_concat_2d.1} parent=1 // pred_check
      _
    $region19: #{_fused_concat_2d.1} parent=1 // pred_check_branch
      %49 = sbr.rel (0) target = $region21
    $region20: #{_fused_concat_2d.1} parent=1 // pred_region
      %51 = dma.done [#allocation6], 128
    $region21: #{_fused_concat_2d.1} parent=1 // pred_fallthru
      _
    // Predicated region
    $region22: #{_fused_concat_2d.1} parent=1 // pred_check
      _
    $region23: #{_fused_concat_2d.1} parent=1 // pred_check_branch
      %53 = sbr.rel (0) target = $region25
    $region24: #{_fused_concat_2d.1} parent=1 // pred_region
      %55 = dma.done [#allocation6], 128
    $region25: #{_fused_concat_2d.1} parent=1 // pred_fallthru
      _
    %v56 = vld [vmem:[#allocation2] sm:$0xff]
    %v57 = vld [vmem:[#allocation5] sm:$0xff]
    %v58 = vld [vmem:[#allocation7] sm:$0xff]
    %60 = vrot.lane.b32.xlu0 %v57, 32
    %v61 = vpop.permute.xlu0 %60
    %64 = vrot.lane.b32.xlu0 %v58, 96
    %v65 = vpop.permute.xlu0 %64
    %vm67 = vcmask 261120
    %v68 = vsel %vm67, %v56, %v61
    %vm69 = vcmask 785408
    %v70 = vsel %vm69, %v68, %v65
    %71 = vst [vmem:[#allocation8] sm:$0xff] %v70
    // Predicated region
    $region26: #{_fused_concat_2d.1} parent=1 // pred_check
      _
    $region27: #{_fused_concat_2d.1} parent=1 // pred_check_branch
      %73 = sbr.rel (0) target = $region29
    $region28: #{_fused_concat_2d.1} parent=1 // pred_region
      %75 = vsyncadd [#allocation4], 0
      %s77 = sshll.u32 [#allocation8], 4
      %s78 = int_to_ptr.vmem [resolvable:$true] %s77
      %s79 = sshll.u32 %s3, 4
      %s80 = int_to_ptr.hbm [resolvable:$true] %s79
      %82 = dma.vmem_to_hbm [thread:$0]  %s78, 128, %s80, [#allocation4]
    $region29: #{_fused_concat_2d.1} parent=1 // pred_fallthru
      _
    // Predicated region
    $region30: #{_fused_concat_2d.1} parent=1 // pred_check
      _
    $region31: #{_fused_concat_2d.1} parent=1 // pred_check_branch
      %84 = sbr.rel (0) target = $region33
    $region32: #{_fused_concat_2d.1} parent=1 // pred_region
      %86 = dma.done [#allocation4], 128
    $region33: #{_fused_concat_2d.1} parent=1 // pred_fallthru
      _
    %87 = vsyncpa [#allocation3], 1
    %88 = vsyncpa [#allocation6], 1
    %89 = vsyncpa [#allocation4], 1

</llo_original>
